<compile_context>
chip_gen: v6e
topology: v6e:2x2x1
jax: 0.10.0
libtpu: 0.0.40
codegen_flags: <defaults>
</compile_context>

<pallas_src>
from functools import partial

import numpy as np
import jax
import jax.numpy as jnp
from jax.experimental import pallas as pl
from jax.experimental.pallas import tpu as pltpu


def cartesian_prod(*arrays):
    """Same row ordering as torch.cartesian_prod (first arg varies slowest)."""
    grids = np.meshgrid(*arrays, indexing="ij")
    return np.stack(grids, axis=-1).reshape(-1, len(arrays))


def _round_up(x, m):
    return ((x + m - 1) // m) * m


# --------------------------------------------------------------------------- #
# Pallas kernel 1: periodic images + in-bounds mask + flattened cell index.
# Layout: shifts tile on sublanes, atoms on lanes -> (TILE_S, N) lane-dense.
# --------------------------------------------------------------------------- #
def _image_kernel(inv_cl, maxc_ref, mci_ref, coordsT_ref, shifts_ref,
                  imgx_ref, imgy_ref, imgz_ref, nidx_ref, inb_ref):
    # scalars from SMEM
    maxx = maxc_ref[0]
    maxy = maxc_ref[1]
    maxz = maxc_ref[2]
    mcx = mci_ref[0]          # int32 = ceil(maxcoor[0] / cell_list)
    mcy = mci_ref[1]          # int32 = ceil(maxcoor[1] / cell_list)

    cx = coordsT_ref[0:1, :]  # (1, N)  atoms on lanes
    cy = coordsT_ref[1:2, :]
    cz = coordsT_ref[2:3, :]
    sx = shifts_ref[:, 0:1]   # (TILE_S, 1)
    sy = shifts_ref[:, 1:2]
    sz = shifts_ref[:, 2:3]

    ix = sx + cx              # (TILE_S, N) lane-dense periodic image coords
    iy = sy + cy
    iz = sz + cz
    imgx_ref[...] = ix
    imgy_ref[...] = iy
    imgz_ref[...] = iz

    ok = ((ix < maxx) & (ix > 0.0)
          & (iy < maxy) & (iy > 0.0)
          & (iz < maxz) & (iz > 0.0))
    inb_ref[...] = ok.astype(jnp.int8)

    # flattened linked-cell index of every image, exact int32 arithmetic
    cix = jnp.floor(ix * inv_cl).astype(jnp.int32)
    ciy = jnp.floor(iy * inv_cl).astype(jnp.int32)
    ciz = jnp.floor(iz * inv_cl).astype(jnp.int32)
    nidx_ref[...] = ciz * (mcy * mcx) + ciy * mcx + cix


def _image_inbound(coordsT, shifts_pad, maxc, mci, inv_cl, tile_s):
    n = coordsT.shape[1]
    s_pad = shifts_pad.shape[0]
    f32 = jnp.float32
    return pl.pallas_call(
        partial(_image_kernel, float(inv_cl)),
        out_shape=(jax.ShapeDtypeStruct((s_pad, n), f32),
                   jax.ShapeDtypeStruct((s_pad, n), f32),
                   jax.ShapeDtypeStruct((s_pad, n), f32),
                   jax.ShapeDtypeStruct((s_pad, n), jnp.int32),
                   jax.ShapeDtypeStruct((s_pad, n), jnp.int8)),
        grid=(s_pad // tile_s,),
        in_specs=[pl.BlockSpec(memory_space=pltpu.MemorySpace.SMEM),  # maxcoor (3,)
                  pl.BlockSpec(memory_space=pltpu.MemorySpace.SMEM),  # mci (2,) int32
                  pl.BlockSpec((3, n), lambda s: (0, 0)),             # coords^T (3, N)
                  pl.BlockSpec((tile_s, 3), lambda s: (s, 0))],       # shifts tile
        out_specs=(pl.BlockSpec((tile_s, n), lambda s: (s, 0)),
                   pl.BlockSpec((tile_s, n), lambda s: (s, 0)),
                   pl.BlockSpec((tile_s, n), lambda s: (s, 0)),
                   pl.BlockSpec((tile_s, n), lambda s: (s, 0)),
                   pl.BlockSpec((tile_s, n), lambda s: (s, 0))),
        compiler_params=pltpu.CompilerParams(
            dimension_semantics=("parallel",)),
    )(maxc, mci, coordsT, shifts_pad)


# --------------------------------------------------------------------------- #
# Pallas kernel 2: fused linked-cell match + distance criterion, reduced over
# the L linked cells.  Output: per-(atom, image) match COUNT (int8), (N, M).
# Layout: atoms on sublanes, images on lanes -> (TILE_N, TILE_M) lane-dense.
# --------------------------------------------------------------------------- #
def _pair_kernel(cutoff2, eps2, n_linked,
                 coords_ref, imgT_ref, ncell_ref, nimg_ref, out_ref):
    coords = coords_ref[...]          # (TILE_N, 3)
    img = imgT_ref[...]               # (3, TILE_M)
    ncell = ncell_ref[...]            # (TILE_N, L) int32
    nimg = nimg_ref[...]              # (1, TILE_M) int32

    # squared pair distances, lane-dense (no sqrt; compare vs squared cutoffs)
    dx = img[0:1, :] - coords[:, 0:1]
    dy = img[1:2, :] - coords[:, 1:2]
    dz = img[2:3, :] - coords[:, 2:3]
    d2 = dx * dx + dy * dy + dz * dz
    dist_ok = (d2 < cutoff2) & (d2 > eps2)

    # count how many of the L linked cells of atom i contain image j
    cnt = jnp.zeros(d2.shape, jnp.int32)
    for l in range(n_linked):         # static unroll (L = (2*nlinked+1)^3)
        cnt = cnt + (ncell[:, l:l + 1] == nimg).astype(jnp.int32)

    cnt = jnp.where(dist_ok, cnt, 0)
    out_ref[...] = cnt.astype(out_ref.dtype)


def _pair_count(coords_pad, imgT_pad, ncell_pad, nimg_pad,
                cutoff2, eps2, tile_n, tile_m, out_dtype):
    n_pad = coords_pad.shape[0]
    m_pad = imgT_pad.shape[1]
    n_linked = ncell_pad.shape[1]
    return pl.pallas_call(
        partial(_pair_kernel, float(cutoff2), float(eps2), n_linked),
        out_shape=jax.ShapeDtypeStruct((n_pad, m_pad), out_dtype),
        grid=(n_pad // tile_n, m_pad // tile_m),
        in_specs=[pl.BlockSpec((tile_n, 3), lambda i, j: (i, 0)),
                  pl.BlockSpec((3, tile_m), lambda i, j: (0, j)),
                  pl.BlockSpec((tile_n, n_linked), lambda i, j: (i, 0)),
                  pl.BlockSpec((1, tile_m), lambda i, j: (0, j))],
        out_specs=pl.BlockSpec((tile_n, tile_m), lambda i, j: (i, j)),
        compiler_params=pltpu.CompilerParams(
            dimension_semantics=("parallel", "parallel")),
    )(coords_pad, imgT_pad, ncell_pad, nimg_pad)


# --------------------------------------------------------------------------- #
# Module port
# --------------------------------------------------------------------------- #
class NeighList:
    def __init__(self, cutoff: float, nlinked: int):
        self.cutoff = float(cutoff)
        self.nlinked = int(nlinked)
        self.cell_list = self.cutoff / nlinked
        self.inv_cell_list = 1.0 / self.cell_list
        r1 = np.arange(-nlinked, nlinked + 1)
        self.linked = cartesian_prod(r1, r1, r1).reshape(1, -1, 3).astype(np.int32)
        self.L = self.linked.shape[1]
        self.count_dtype = jnp.int8 if self.L <= 127 else jnp.int32
        # squared thresholds, rounded once to f32 for kernel/reference consistency
        self.cutoff2 = float(np.float32(self.cutoff) ** 2)
        self.eps2 = float(np.float32(0.001) ** 2)

    # ------------------------------------------------------------------ #
    def __call__(self, period_table, coordinates, cell, mass, validate=False):
        f32 = jnp.float32
        numatom = int(coordinates.shape[0])
        coordinates = jnp.asarray(coordinates, f32)
        cell = jnp.asarray(cell, f32)
        mass = jnp.asarray(mass, f32)
        hp = jax.lax.Precision.HIGHEST

        # ---- glue: wrap into the cell & remove center of mass ----
        inv_cell = jnp.linalg.inv(cell)
        inv_coor = jnp.einsum('ij,jk->ik', coordinates, inv_cell, precision=hp)
        inv_coor = inv_coor - jnp.round(inv_coor - inv_coor[0])
        coordinates = jnp.einsum('ij,jk->ik', inv_coor, cell, precision=hp)
        totmass = jnp.sum(mass)
        com = jnp.einsum('i,ij->j', mass, coordinates, precision=hp) / totmass
        coordinates = coordinates - com[None, :]

        # ---- glue: periodic replica enumeration (data-dependent sizes) ----
        # (orthogonal-cell assumption, exactly like the reference module)
        num_repeats = jnp.ceil(jnp.min(self.cutoff / jnp.abs(cell), axis=0)).astype(jnp.int32)
        num_repeats = jnp.asarray(period_table, jnp.int32) * num_repeats
        nr = np.asarray(num_repeats)                   # tiny host sync (3 ints)
        r1 = np.arange(-nr[0], nr[0] + 1)
        r2 = np.arange(-nr[1], nr[1] + 1)
        r3 = np.arange(-nr[2], nr[2] + 1)
        shifts_frac = cartesian_prod(r1, r2, r3).astype(np.float32)      # (S, 3)
        S = shifts_frac.shape[0]
        shifts = jnp.einsum('ij,jk->ik', jnp.asarray(shifts_frac), cell, precision=hp)

        mincoor = jnp.min(coordinates, axis=0) - self.cutoff - 1e-6
        coordinates = coordinates - mincoor
        maxcoor = jnp.max(coordinates, axis=0) + self.cutoff             # (3,)
        max_cell_index = jnp.ceil(maxcoor / self.cell_list)

        # ---- Pallas kernel 1: images + in-bounds + flattened image cell index ----
        coordsT = jnp.transpose(coordinates)                             # (3, N)
        TILE_S = 32
        S_pad = _round_up(S, TILE_S)
        # padded shift rows pushed far out of bounds -> always masked out
        shifts_pad = jnp.full((S_pad, 3), 1e30, f32).at[:S].set(shifts)
        maxc = maxcoor.astype(f32)                                       # (3,)  SMEM
        mci = max_cell_index[:2].astype(jnp.int32)                       # (2,)  SMEM

        imgx, imgy, imgz, nidx, inb = _image_inbound(
            coordsT, shifts_pad, maxc, mci, self.inv_cell_list, TILE_S)

        # ---- select in-bounds images ----
        # TODO(synk): torch.nonzero / index_select have data-dependent output
        # sizes; the nonzero runs on host, the dependent gathers stay on device.
        inb_host = np.asarray(inb[:S, :])                                # (S, N) int8
        flat_idx = np.nonzero(inb_host.reshape(-1))[0]                   # k = s*N + n
        M = int(flat_idx.shape[0])
        if M == 0:
            return (jnp.zeros((2, 0), jnp.int32), jnp.zeros((0, 3), f32))
        s_idx = (flat_idx // numatom).astype(np.int32)
        a_idx = (flat_idx % numatom).astype(np.int32)
        s_d = jnp.asarray(s_idx)
        a_d = jnp.asarray(a_idx)

        ix_m = imgx[s_d, a_d]                                            # (M,)
        iy_m = imgy[s_d, a_d]
        iz_m = imgz[s_d, a_d]
        nimg_m = nidx[s_d, a_d]                                          # (M,) int32

        # ---- pad everything to (32k sublanes x 128k lanes) tiles ----
        TILE_M = 512 if M >= 512 else _round_up(M, 128)
        M_pad = _round_up(M, TILE_M)
        TILE_N = 256 if numatom >= 256 else _round_up(numatom, 32)
        N_pad = _round_up(numatom, TILE_N)

        imgT_pad = jnp.zeros((3, M_pad), f32)
        imgT_pad = imgT_pad.at[0, :M].set(ix_m).at[1, :M].set(iy_m).at[2, :M].set(iz_m)
        nimg_pad = jnp.full((1, M_pad), -1, jnp.int32).at[0, :M].set(nimg_m)
        coords_pad = jnp.zeros((N_pad, 3), f32).at[:numatom].set(coordinates)

        # linked-cell index table for every atom (N, L), exact int32 arithmetic
        ori = jnp.floor(coordinates * self.inv_cell_list).astype(jnp.int32)   # (N, 3)
        neigh = ori[:, None, :] + jnp.asarray(self.linked)                    # (N, L, 3)
        mcx = mci[0]
        mcy = mci[1]
        ncell = (neigh[:, :, 2] * (mcy * mcx)
                 + neigh[:, :, 1] * mcx
                 + neigh[:, :, 0])                                            # (N, L)
        ncell_pad = jnp.full((N_pad, self.L), -2, jnp.int32).at[:numatom].set(ncell)

        # ---- Pallas kernel 2: fused cell-match + distance, reduced over L ----
        cnt = _pair_count(coords_pad, imgT_pad, ncell_pad, nimg_pad,
                          self.cutoff2, self.eps2, TILE_N, TILE_M, self.count_dtype)

        # ---- host: expand counts into pairs (data-dependent output size) ----
        cnt_host = np.asarray(cnt[:numatom, :M]).astype(np.int64)        # (N, M)
        ai, aj = np.nonzero(cnt_host)                                    # (i, j) lex order
        reps = cnt_host[ai, aj]
        ai = np.repeat(ai, reps)                                         # duplicates kept,
        aj = np.repeat(aj, reps)                                         # same order as torch
        neigh_list = np.vstack((ai, a_idx[aj])).astype(np.int32)
        shifts_np = np.asarray(shifts)
        shifts_out = shifts_np[s_idx[aj]]

        if validate:
            ref_nl, ref_sh = self._reference_core(
                np.asarray(coordinates), shifts_np, np.asarray(maxc), np.asarray(mci))
            assert np.array_equal(neigh_list, ref_nl)
            assert np.array_equal(shifts_out, ref_sh)

        return jnp.asarray(neigh_list), jnp.asarray(shifts_out)

    # ------------------------------------------------------------------ #
    def _reference_core(self, coords, shifts, maxcoor, mci):
        """Pure-numpy mirror of the device pipeline (same f32 ops / int indices)."""
        coords = coords.astype(np.float32)
        shifts = shifts.astype(np.float32)
        N = coords.shape[0]
        inv_cl = np.float32(self.inv_cell_list)
        mcx, mcy = int(mci[0]), int(mci[1])

        img = coords[None, :, :] + shifts[:, None, :]                    # (S, N, 3)
        inb = np.all((img < maxcoor[None, None, :]) & (img > 0.0), axis=-1)
        flat = np.nonzero(inb.reshape(-1))[0]
        s_idx = flat // N
        a_idx = flat % N
        img_m = img.reshape(-1, 3)[flat]                                 # (M, 3)

        iidx = np.floor(img_m * inv_cl).astype(np.int64)
        nimg = iidx[:, 2] * (mcy * mcx) + iidx[:, 1] * mcx + iidx[:, 0]  # (M,)
        ori = np.floor(coords * inv_cl).astype(np.int64)
        neigh = ori[:, None, :] + self.linked.astype(np.int64)           # (N, L, 3)
        ncell = (neigh[:, :, 2] * (mcy * mcx)
                 + neigh[:, :, 1] * mcx + neigh[:, :, 0])                # (N, L)

        eq = ncell[:, None, :] == nimg[None, :, None]                    # (N, M, L)
        diff = img_m[None, :, :] - coords[:, None, :]
        d2 = (diff[..., 0] * diff[..., 0]
              + diff[..., 1] * diff[..., 1]
              + diff[..., 2] * diff[..., 2])
        dist_ok = (d2 < np.float32(self.cutoff2)) & (d2 > np.float32(self.eps2))
        good = eq & dist_ok[:, :, None]

        ai, aj, _ = np.nonzero(good)                                     # lex (i, j, l)
        neigh_list = np.vstack((ai, a_idx[aj])).astype(np.int32)
        shifts_out = shifts[s_idx[aj]]
        return neigh_list, shifts_out


if __name__ == "__main__":
    key = jax.random.PRNGKey(0)
    k1, k2 = jax.random.split(key)

    numatom = 8
    box = jnp.array([6.0, 6.5, 7.0], dtype=jnp.float32)
    cell = jnp.diag(box)                                                 # (3, 3)
    coordinates = jax.random.uniform(k1, (numatom, 3), dtype=jnp.float32) * box
    mass = jax.random.uniform(k2, (numatom,), dtype=jnp.float32) * 10.0 + 1.0
    period_table = jnp.array([1, 1, 1], dtype=jnp.int32)                 # fully periodic

    nl = NeighList(cutoff=3.0, nlinked=1)
    neigh_list, shifts = nl(period_table, coordinates, cell, mass, validate=True)
    neigh_list, shifts = jax.block_until_ready((neigh_list, shifts))

    assert neigh_list.shape[0] == 2
    assert shifts.shape == (neigh_list.shape[1], 3)
    assert neigh_list.shape[1] > 0
    print("KERNEL_OK")
</pallas_src>

<mosaic_0001>
module attributes {stable_mosaic.version = 11 : i64} {
  func.func @_image_kernel(%arg0: i32, %arg1: memref<3xf32, #tpu.memory_space<smem>>, %arg2: memref<2xi32, #tpu.memory_space<smem>>, %arg3: memref<3x8xf32, #tpu.memory_space<vmem>>, %arg4: memref<32x3xf32, #tpu.memory_space<vmem>>, %arg5: memref<32x8xf32, #tpu.memory_space<vmem>>, %arg6: memref<32x8xf32, #tpu.memory_space<vmem>>, %arg7: memref<32x8xf32, #tpu.memory_space<vmem>>, %arg8: memref<32x8xi32, #tpu.memory_space<vmem>>, %arg9: memref<32x8xi8, #tpu.memory_space<vmem>>) attributes {dimension_semantics = [#tpu.dimension_semantics<parallel>], iteration_bounds = array<i64: 1>, scalar_prefetch = 0 : i64, scratch_operands = 0 : i64, tpu.core_type = #tpu.core_type<tc>, window_params = [{transform_indices = @transform_0, window_bounds = array<i64: 3>}, {transform_indices = @transform_1, window_bounds = array<i64: 2>}, {pipeline_mode = #tpu.pipeline_mode<synchronous>, transform_indices = @transform_2, window_bounds = array<i64: 3, 8>}, {transform_indices = @transform_3, window_bounds = array<i64: 32, 3>}, {transform_indices = @transform_4, window_bounds = array<i64: 32, 8>}, {transform_indices = @transform_5, window_bounds = array<i64: 32, 8>}, {transform_indices = @transform_6, window_bounds = array<i64: 32, 8>}, {transform_indices = @transform_7, window_bounds = array<i64: 32, 8>}, {transform_indices = @transform_8, window_bounds = array<i64: 32, 8>}]} {
    %c0 = arith.constant 0 : index
    %0 = memref.load %arg1[%c0] : memref<3xf32, #tpu.memory_space<smem>>
    %c1 = arith.constant 1 : index
    %1 = memref.load %arg1[%c1] : memref<3xf32, #tpu.memory_space<smem>>
    %c2 = arith.constant 2 : index
    %2 = memref.load %arg1[%c2] : memref<3xf32, #tpu.memory_space<smem>>
    %c0_0 = arith.constant 0 : index
    %3 = memref.load %arg2[%c0_0] : memref<2xi32, #tpu.memory_space<smem>>
    %c1_1 = arith.constant 1 : index
    %4 = memref.load %arg2[%c1_1] : memref<2xi32, #tpu.memory_space<smem>>
    %c0_2 = arith.constant 0 : index
    %c0_3 = arith.constant 0 : index
    %5 = vector.load %arg3[%c0_2, %c0_3] : memref<3x8xf32, #tpu.memory_space<vmem>>, vector<1x8xf32>
    %c1_4 = arith.constant 1 : index
    %c0_5 = arith.constant 0 : index
    %6 = vector.load %arg3[%c1_4, %c0_5] : memref<3x8xf32, #tpu.memory_space<vmem>>, vector<1x8xf32>
    %c2_6 = arith.constant 2 : index
    %c0_7 = arith.constant 0 : index
    %7 = vector.load %arg3[%c2_6, %c0_7] : memref<3x8xf32, #tpu.memory_space<vmem>>, vector<1x8xf32>
    %c0_8 = arith.constant 0 : index
    %c0_9 = arith.constant 0 : index
    %8 = vector.load %arg4[%c0_8, %c0_9] : memref<32x3xf32, #tpu.memory_space<vmem>>, vector<32x1xf32>
    %c0_10 = arith.constant 0 : index
    %c1_11 = arith.constant 1 : index
    %9 = vector.load %arg4[%c0_10, %c1_11] : memref<32x3xf32, #tpu.memory_space<vmem>>, vector<32x1xf32>
    %c0_12 = arith.constant 0 : index
    %c2_13 = arith.constant 2 : index
    %10 = vector.load %arg4[%c0_12, %c2_13] : memref<32x3xf32, #tpu.memory_space<vmem>>, vector<32x1xf32>
    %11 = vector.broadcast %8 : vector<32x1xf32> to vector<32x8xf32>
    %12 = vector.broadcast %5 : vector<1x8xf32> to vector<32x8xf32>
    %13 = arith.addf %11, %12 : vector<32x8xf32>
    %14 = vector.broadcast %9 : vector<32x1xf32> to vector<32x8xf32>
    %15 = vector.broadcast %6 : vector<1x8xf32> to vector<32x8xf32>
    %16 = arith.addf %14, %15 : vector<32x8xf32>
    %17 = vector.broadcast %10 : vector<32x1xf32> to vector<32x8xf32>
    %18 = vector.broadcast %7 : vector<1x8xf32> to vector<32x8xf32>
    %19 = arith.addf %17, %18 : vector<32x8xf32>
    %c0_14 = arith.constant 0 : index
    %c0_15 = arith.constant 0 : index
    %20 = vector.load %arg5[%c0_14, %c0_15] : memref<32x8xf32, #tpu.memory_space<vmem>>, vector<32x8xf32>
    tpu.vector_store %arg5[%c0_14, %c0_15], %13 {strides = array<i32>} : memref<32x8xf32, #tpu.memory_space<vmem>>, vector<32x8xf32>,
    %c0_16 = arith.constant 0 : index
    %c0_17 = arith.constant 0 : index
    %21 = vector.load %arg6[%c0_16, %c0_17] : memref<32x8xf32, #tpu.memory_space<vmem>>, vector<32x8xf32>
    tpu.vector_store %arg6[%c0_16, %c0_17], %16 {strides = array<i32>} : memref<32x8xf32, #tpu.memory_space<vmem>>, vector<32x8xf32>,
    %c0_18 = arith.constant 0 : index
    %c0_19 = arith.constant 0 : index
    %22 = vector.load %arg7[%c0_18, %c0_19] : memref<32x8xf32, #tpu.memory_space<vmem>>, vector<32x8xf32>
    tpu.vector_store %arg7[%c0_18, %c0_19], %19 {strides = array<i32>} : memref<32x8xf32, #tpu.memory_space<vmem>>, vector<32x8xf32>,
    %23 = vector.broadcast %0 : f32 to vector<32x8xf32>
    %24 = arith.cmpf olt, %13, %23 : vector<32x8xf32>
    %cst = arith.constant 0.000000e+00 : f32
    %25 = vector.broadcast %cst : f32 to vector<32x8xf32>
    %26 = arith.cmpf ogt, %13, %25 : vector<32x8xf32>
    %27 = arith.andi %24, %26 : vector<32x8xi1>
    %28 = vector.broadcast %1 : f32 to vector<32x8xf32>
    %29 = arith.cmpf olt, %16, %28 : vector<32x8xf32>
    %30 = arith.andi %27, %29 : vector<32x8xi1>
    %cst_20 = arith.constant 0.000000e+00 : f32
    %31 = vector.broadcast %cst_20 : f32 to vector<32x8xf32>
    %32 = arith.cmpf ogt, %16, %31 : vector<32x8xf32>
    %33 = arith.andi %30, %32 : vector<32x8xi1>
    %34 = vector.broadcast %2 : f32 to vector<32x8xf32>
    %35 = arith.cmpf olt, %19, %34 : vector<32x8xf32>
    %36 = arith.andi %33, %35 : vector<32x8xi1>
    %cst_21 = arith.constant 0.000000e+00 : f32
    %37 = vector.broadcast %cst_21 : f32 to vector<32x8xf32>
    %38 = arith.cmpf ogt, %19, %37 : vector<32x8xf32>
    %39 = arith.andi %36, %38 : vector<32x8xi1>
    %40 = arith.extui %39 : vector<32x8xi1> to vector<32x8xi8>
    %c0_22 = arith.constant 0 : index
    %c0_23 = arith.constant 0 : index
    %41 = vector.load %arg9[%c0_22, %c0_23] : memref<32x8xi8, #tpu.memory_space<vmem>>, vector<32x8xi8>
    tpu.vector_store %arg9[%c0_22, %c0_23], %40 {strides = array<i32>} : memref<32x8xi8, #tpu.memory_space<vmem>>, vector<32x8xi8>,
    %cst_24 = arith.constant 0.333333343 : f32
    %42 = vector.broadcast %cst_24 : f32 to vector<32x8xf32>
    %43 = arith.mulf %13, %42 : vector<32x8xf32>
    %44 = math.floor %43 : vector<32x8xf32>
    %45 = arith.fptosi %44 : vector<32x8xf32> to vector<32x8xi32>
    %cst_25 = arith.constant 0.333333343 : f32
    %46 = vector.broadcast %cst_25 : f32 to vector<32x8xf32>
    %47 = arith.mulf %16, %46 : vector<32x8xf32>
    %48 = math.floor %47 : vector<32x8xf32>
    %49 = arith.fptosi %48 : vector<32x8xf32> to vector<32x8xi32>
    %cst_26 = arith.constant 0.333333343 : f32
    %50 = vector.broadcast %cst_26 : f32 to vector<32x8xf32>
    %51 = arith.mulf %19, %50 : vector<32x8xf32>
    %52 = math.floor %51 : vector<32x8xf32>
    %53 = arith.fptosi %52 : vector<32x8xf32> to vector<32x8xi32>
    %54 = arith.muli %4, %3 : i32
    %55 = vector.broadcast %54 : i32 to vector<32x8xi32>
    %56 = arith.muli %53, %55 : vector<32x8xi32>
    %57 = vector.broadcast %3 : i32 to vector<32x8xi32>
    %58 = arith.muli %49, %57 : vector<32x8xi32>
    %59 = arith.addi %56, %58 : vector<32x8xi32>
    %60 = arith.addi %59, %45 : vector<32x8xi32>
    %c0_27 = arith.constant 0 : index
    %c0_28 = arith.constant 0 : index
    %61 = vector.load %arg8[%c0_27, %c0_28] : memref<32x8xi32, #tpu.memory_space<vmem>>, vector<32x8xi32>
    tpu.vector_store %arg8[%c0_27, %c0_28], %60 {strides = array<i32>} : memref<32x8xi32, #tpu.memory_space<vmem>>, vector<32x8xi32>,
    return
  }
  func.func @transform_0(%arg0: i32) -> i32 {
    %c0_i32 = arith.constant 0 : i32
    %c0_i32_0 = arith.constant 0 : i32
    return %c0_i32 : i32
  }
  func.func @transform_1(%arg0: i32) -> i32 {
    %c0_i32 = arith.constant 0 : i32
    %c0_i32_0 = arith.constant 0 : i32
    return %c0_i32 : i32
  }
  func.func @transform_2(%arg0: i32) -> (i32, i32) {
    %c0_i32 = arith.constant 0 : i32
    %c0_i32_0 = arith.constant 0 : i32
    %c0_i32_1 = arith.constant 0 : i32
    return %c0_i32, %c0_i32_0 : i32, i32
  }
  func.func @transform_3(%arg0: i32) -> (i32, i32) {
    %c0_i32 = arith.constant 0 : i32
    %c0_i32_0 = arith.constant 0 : i32
    return %arg0, %c0_i32 : i32, i32
  }
  func.func @transform_4(%arg0: i32) -> (i32, i32) {
    %c0_i32 = arith.constant 0 : i32
    %c0_i32_0 = arith.constant 0 : i32
    return %arg0, %c0_i32 : i32, i32
  }
  func.func @transform_5(%arg0: i32) -> (i32, i32) {
    %c0_i32 = arith.constant 0 : i32
    %c0_i32_0 = arith.constant 0 : i32
    return %arg0, %c0_i32 : i32, i32
  }
  func.func @transform_6(%arg0: i32) -> (i32, i32) {
    %c0_i32 = arith.constant 0 : i32
    %c0_i32_0 = arith.constant 0 : i32
    return %arg0, %c0_i32 : i32, i32
  }
  func.func @transform_7(%arg0: i32) -> (i32, i32) {
    %c0_i32 = arith.constant 0 : i32
    %c0_i32_0 = arith.constant 0 : i32
    return %arg0, %c0_i32 : i32, i32
  }
  func.func @transform_8(%arg0: i32) -> (i32, i32) {
    %c0_i32 = arith.constant 0 : i32
    %c0_i32_0 = arith.constant 0 : i32
    return %arg0, %c0_i32 : i32, i32
  }
}

</mosaic_0001>

<llo_original>
// kernel: tpu_custom_call.1
$region0: #{tpu_custom_call.1}
  #allocation0 [shape = 'u32[]', space=smem, size = 0x4, offset = 0x4, fixed_abs, tag = 'smem constant byte address 0x4 - core index']
  #allocation1 [shape = 'u32[144,128]{1,0:T(1,128)}', space=vmem, size = 0x12000, scoped, tag = 'internal scratch']
  %s0 = inlined_call_operand.vmem [shape: f32[3], index: 0, kind: input, shape index: {}]
  %s1 = inlined_call_operand.vmem [shape: s32[2], index: 1, kind: input, shape index: {}]
  %s2 = inlined_call_operand.vmem [shape: f32[3,8], index: 2, kind: input, shape index: {}]
  %s3 = inlined_call_operand.vmem [shape: f32[32,3], index: 3, kind: input, shape index: {}]
  %s4 = inlined_call_operand.vmem [shape: f32[32,8], index: 4, kind: output, shape index: {0}]
  %s5 = inlined_call_operand.vmem [shape: f32[32,8], index: 5, kind: output, shape index: {1}]
  %s6 = inlined_call_operand.vmem [shape: f32[32,8], index: 6, kind: output, shape index: {2}]
  %s7 = inlined_call_operand.vmem [shape: s32[32,8], index: 7, kind: output, shape index: {3}]
  %s8 = inlined_call_operand.vmem [shape: s8[32,8], index: 8, kind: output, shape index: {4}]
  %9 = xla_tuple %s4, %s5, %s6, %s7, %s8
  %s10 = sld [smem:[#allocation0]]
  $region66: #{tpu_custom_call.1} parent=0
    _
  %s12 = ssub.s32 1, %s10
  %s13 = scalar_select 0, %s12, %s10
  $region1: #{tpu_custom_call.1} parent=0
    #allocation2 [shape = 'u8[512]{0}', space=smem, size = 0x200, scoped, tag = 'input window, operand 0, single buffered']
    #allocation3 [shape = 's32[1]{0}', space=sflag, size = 0x4, scoped, tag = 'scoped memory for tpu_custom_call.1']
    #allocation4 [shape = 'u8[512]{0}', space=smem, size = 0x200, scoped, tag = 'input window, operand 1, single buffered']
    #allocation5 [shape = 's32[1]{0}', space=sflag, size = 0x4, scoped, tag = 'scoped memory for tpu_custom_call.1']
    %14 = vsyncpa [#allocation3], 0
    %15 = vsyncpa [#allocation5], 0
    // Predicated region
    $region2: #{tpu_custom_call.1} parent=1 // pred_check
      _
    $region3: #{tpu_custom_call.1} parent=1 // pred_check_branch
      %17 = sbr.rel (0) target = $region5
    $region4: #{tpu_custom_call.1} parent=1 // pred_region
      %s19 = ssub.s32 16, 16
      %20 = vsyncadd [#allocation3], %s19
      %s22 = sshll.u32 %s0, 4
      %s23 = int_to_ptr.vmem [resolvable:$true] %s22
      %25 = dma.vmem_to_smem %s23, 16, [#allocation2], [#allocation3]
    $region5: #{tpu_custom_call.1} parent=1 // pred_fallthru
      _
    // Predicated region
    $region6: #{tpu_custom_call.1} parent=1 // pred_check
      _
    $region7: #{tpu_custom_call.1} parent=1 // pred_check_branch
      %27 = sbr.rel (0) target = $region9
    $region8: #{tpu_custom_call.1} parent=1 // pred_region
      %s29 = ssub.s32 16, 16
      %30 = vsyncadd [#allocation5], %s29
      %s32 = sshll.u32 %s1, 4
      %s33 = int_to_ptr.vmem [resolvable:$true] %s32
      %35 = dma.vmem_to_smem %s33, 16, [#allocation4], [#allocation5]
    $region9: #{tpu_custom_call.1} parent=1 // pred_fallthru
      _
    // Predicated region
    $region10: #{tpu_custom_call.1} parent=1 // pred_check
      _
    $region11: #{tpu_custom_call.1} parent=1 // pred_check_branch
      %37 = sbr.rel (0) target = $region13
    $region12: #{tpu_custom_call.1} parent=1 // pred_region
      _
    $region13: #{tpu_custom_call.1} parent=1 // pred_fallthru
      _
    // Predicated region
    $region14: #{tpu_custom_call.1} parent=1 // pred_check
      _
    $region15: #{tpu_custom_call.1} parent=1 // pred_check_branch
      %39 = sbr.rel (0) target = $region17
    $region16: #{tpu_custom_call.1} parent=1 // pred_region
      _
    $region17: #{tpu_custom_call.1} parent=1 // pred_fallthru
      _
    // Predicated region
    $region18: #{tpu_custom_call.1} parent=1 // pred_check
      _
    $region19: #{tpu_custom_call.1} parent=1 // pred_check_branch
      %41 = sbr.rel (0) target = $region21
    $region20: #{tpu_custom_call.1} parent=1 // pred_region
      %42 = dma.done [#allocation3], 16
    $region21: #{tpu_custom_call.1} parent=1 // pred_fallthru
      _
    // Predicated region
    $region22: #{tpu_custom_call.1} parent=1 // pred_check
      _
    $region23: #{tpu_custom_call.1} parent=1 // pred_check_branch
      %44 = sbr.rel (0) target = $region25
    $region24: #{tpu_custom_call.1} parent=1 // pred_region
      %45 = dma.done [#allocation5], 16
    $region25: #{tpu_custom_call.1} parent=1 // pred_fallthru
      _
    %46 = sfence
    %s49 = sld [smem:[#allocation2]]
    %s50 = sld [smem:[#allocation2 + $0x1]]
    %s51 = sld [smem:[#allocation2 + $0x2]]
    %s52 = sld [smem:[#allocation4]]
    %s53 = sld [smem:[#allocation4 + $0x1]]
    %v54 = vld [vmem:[%s2] sm:$0x1]
    %v55 = vld [vmem:[%s2 + $0x1] sm:$0x1]
    %v56 = vld [vmem:[%s2 + $0x2] sm:$0x1]
    %v57 = vld [vmem:[%s3] sm:$0xff]
    %v58 = vld [vmem:[%s3 + $0x8] sm:$0xff]
    %v59 = vld [vmem:[%s3 + $0x10] sm:$0xff]
    %v60 = vld [vmem:[%s3 + $0x18] sm:$0xff]
    %62 = vset.pattern.permute.xlu0 0
    %63 = vperm.xlu0 %62, %v57
    %v64 = vpop.permute.xlu0 %63
    %67 = vset.pattern.permute.xlu0 0
    %68 = vperm.xlu0 %67, %v58
    %v69 = vpop.permute.xlu0 %68
    %72 = vset.pattern.permute.xlu0 0
    %73 = vperm.xlu0 %72, %v59
    %v74 = vpop.permute.xlu0 %73
    %77 = vset.pattern.permute.xlu0 0
    %78 = vperm.xlu0 %77, %v60
    %v79 = vpop.permute.xlu0 %78
    %v81 = vlaneseq
    %v82 = vshrl.u32 %v81, 7
    %v83 = vsub.s32 0, %v82
    %v84 = vrot.slane %v54, %v83
    %v85 = vadd.f32 %v64, %v84
    %v86 = vadd.f32 %v69, %v84
    %v87 = vadd.f32 %v74, %v84
    %v88 = vadd.f32 %v79, %v84
    %89 = vset.pattern.permute.xlu0 1
    %90 = vperm.xlu0 %89, %v57
    %v91 = vpop.permute.xlu0 %90
    %93 = vset.pattern.permute.xlu0 1
    %94 = vperm.xlu0 %93, %v58
    %v95 = vpop.permute.xlu0 %94
    %97 = vset.pattern.permute.xlu0 1
    %98 = vperm.xlu0 %97, %v59
    %v99 = vpop.permute.xlu0 %98
    %101 = vset.pattern.permute.xlu0 1
    %102 = vperm.xlu0 %101, %v60
    %v103 = vpop.permute.xlu0 %102
    %v105 = vlaneseq
    %v106 = vshrl.u32 %v105, 7
    %v107 = vsub.s32 0, %v106
    %v108 = vrot.slane %v55, %v107
    %v109 = vadd.f32 %v91, %v108
    %v110 = vadd.f32 %v95, %v108
    %v111 = vadd.f32 %v99, %v108
    %v112 = vadd.f32 %v103, %v108
    %113 = vset.pattern.permute.xlu0 2
    %114 = vperm.xlu0 %113, %v57
    %v115 = vpop.permute.xlu0 %114
    %117 = vset.pattern.permute.xlu0 2
    %118 = vperm.xlu0 %117, %v58
    %v119 = vpop.permute.xlu0 %118
    %121 = vset.pattern.permute.xlu0 2
    %122 = vperm.xlu0 %121, %v59
    %v123 = vpop.permute.xlu0 %122
    %125 = vset.pattern.permute.xlu0 2
    %126 = vperm.xlu0 %125, %v60
    %v127 = vpop.permute.xlu0 %126
    %v129 = vlaneseq
    %v130 = vshrl.u32 %v129, 7
    %v131 = vsub.s32 0, %v130
    %v132 = vrot.slane %v56, %v131
    %v133 = vadd.f32 %v115, %v132
    %v134 = vadd.f32 %v119, %v132
    %v135 = vadd.f32 %v123, %v132
    %v136 = vadd.f32 %v127, %v132
    %vm137 = vcmask 64512
    %138 = vst.msk [vmem:[%s4] sm:$0xff] %vm137, %v85
    %139 = vst.msk [vmem:[%s4 + $0x8] sm:$0xff] %vm137, %v86
    %140 = vst.msk [vmem:[%s4 + $0x10] sm:$0xff] %vm137, %v87
    %141 = vst.msk [vmem:[%s4 + $0x18] sm:$0xff] %vm137, %v88
    %142 = vst.msk [vmem:[%s5] sm:$0xff] %vm137, %v109
    %143 = vst.msk [vmem:[%s5 + $0x8] sm:$0xff] %vm137, %v110
    %144 = vst.msk [vmem:[%s5 + $0x10] sm:$0xff] %vm137, %v111
    %145 = vst.msk [vmem:[%s5 + $0x18] sm:$0xff] %vm137, %v112
    %146 = vst.msk [vmem:[%s6] sm:$0xff] %vm137, %v133
    %147 = vst.msk [vmem:[%s6 + $0x8] sm:$0xff] %vm137, %v134
    %148 = vst.msk [vmem:[%s6 + $0x10] sm:$0xff] %vm137, %v135
    %149 = vst.msk [vmem:[%s6 + $0x18] sm:$0xff] %vm137, %v136
    %v150 = vstv %s49
    %vm151 = vcmp.lt.f32.partialorder %v85, %v150
    %vm152 = vcmp.lt.f32.partialorder %v86, %v150
    %vm153 = vcmp.lt.f32.partialorder %v87, %v150
    %vm154 = vcmp.lt.f32.partialorder %v88, %v150
    %vm155 = vcmp.gt.f32.partialorder %v85, 0.0
    %vm156 = vcmp.gt.f32.partialorder %v86, 0.0
    %vm157 = vcmp.gt.f32.partialorder %v87, 0.0
    %vm158 = vcmp.gt.f32.partialorder %v88, 0.0
    %vm159 = vmand %vm151, %vm155
    %vm160 = vmand %vm152, %vm156
    %vm161 = vmand %vm153, %vm157
    %vm162 = vmand %vm154, %vm158
    %v163 = vstv %s50
    %vm164 = vcmp.lt.f32.partialorder %v109, %v163
    %vm165 = vcmp.lt.f32.partialorder %v110, %v163
    %vm166 = vcmp.lt.f32.partialorder %v111, %v163
    %vm167 = vcmp.lt.f32.partialorder %v112, %v163
    %vm168 = vmand %vm159, %vm164
    %vm169 = vmand %vm160, %vm165
    %vm170 = vmand %vm161, %vm166
    %vm171 = vmand %vm162, %vm167
    %vm172 = vcmp.gt.f32.partialorder %v109, 0.0
    %vm173 = vcmp.gt.f32.partialorder %v110, 0.0
    %vm174 = vcmp.gt.f32.partialorder %v111, 0.0
    %vm175 = vcmp.gt.f32.partialorder %v112, 0.0
    %vm176 = vmand %vm168, %vm172
    %vm177 = vmand %vm169, %vm173
    %vm178 = vmand %vm170, %vm174
    %vm179 = vmand %vm171, %vm175
    %v180 = vstv %s51
    %vm181 = vcmp.lt.f32.partialorder %v133, %v180
    %vm182 = vcmp.lt.f32.partialorder %v134, %v180
    %vm183 = vcmp.lt.f32.partialorder %v135, %v180
    %vm184 = vcmp.lt.f32.partialorder %v136, %v180
    %vm185 = vmand %vm176, %vm181
    %vm186 = vmand %vm177, %vm182
    %vm187 = vmand %vm178, %vm183
    %vm188 = vmand %vm179, %vm184
    %vm189 = vcmp.gt.f32.partialorder %v133, 0.0
    %vm190 = vcmp.gt.f32.partialorder %v134, 0.0
    %vm191 = vcmp.gt.f32.partialorder %v135, 0.0
    %vm192 = vcmp.gt.f32.partialorder %v136, 0.0
    %vm193 = vmand %vm185, %vm189
    %vm194 = vmand %vm186, %vm190
    %vm195 = vmand %vm187, %vm191
    %vm196 = vmand %vm188, %vm192
    %vm197 = vmpackc.low %vm194, %vm193
    %vm198 = vmpackc.low %vm196, %vm195
    %vm199 = vmpackc.even %vm198, %vm197
    %v200 = vsel %vm199, 16843009, 0
    %v201 = vunpack.c.0.s8 %v200
    %v202 = vunpack.c.1.s8 %v200
    %v203 = vunpack.c.2.s8 %v200
    %v204 = vunpack.c.3.s8 %v200
    %v205 = vpack.c.b16 %v201, %v201
    %v206 = vpack.c.b8 %v205, %v205
    %v207 = vpack.c.b16 %v202, %v202
    %v208 = vpack.c.b8 %v207, %v207
    %v209 = vpack.c.b16 %v203, %v203
    %v210 = vpack.c.b8 %v209, %v209
    %v211 = vpack.c.b16 %v204, %v204
    %v212 = vpack.c.b8 %v211, %v211
    %vm213 = vcmask 58368
    %214 = vst.msk [vmem:[%s8] sm:$0x3] %vm213, %v206
    %215 = vst.msk [vmem:[%s8 + $0x2] sm:$0x3] %vm213, %v208
    %216 = vst.msk [vmem:[%s8 + $0x4] sm:$0x3] %vm213, %v210
    %217 = vst.msk [vmem:[%s8 + $0x6] sm:$0x3] %vm213, %v212
    %v218 = vmul.f32 %v85, 0.33333334
    %v219 = vmul.f32 %v86, 0.33333334
    %v220 = vmul.f32 %v87, 0.33333334
    %v221 = vmul.f32 %v88, 0.33333334
    %v222 = vfloor.f32 %v218
    %v223 = vfloor.f32 %v219
    %v224 = vfloor.f32 %v220
    %v225 = vfloor.f32 %v221
    %v226 = vcvt.f32.s32.to.zero.pseudo %v222
    %v227 = vcvt.f32.s32.to.zero.pseudo %v223
    %v228 = vcvt.f32.s32.to.zero.pseudo %v224
    %v229 = vcvt.f32.s32.to.zero.pseudo %v225
    %v230 = vmul.f32 %v109, 0.33333334
    %v231 = vmul.f32 %v110, 0.33333334
    %v232 = vmul.f32 %v111, 0.33333334
    %v233 = vmul.f32 %v112, 0.33333334
    %v234 = vfloor.f32 %v230
    %v235 = vfloor.f32 %v231
    %v236 = vfloor.f32 %v232
    %v237 = vfloor.f32 %v233
    %v238 = vcvt.f32.s32.to.zero.pseudo %v234
    %v239 = vcvt.f32.s32.to.zero.pseudo %v235
    %v240 = vcvt.f32.s32.to.zero.pseudo %v236
    %v241 = vcvt.f32.s32.to.zero.pseudo %v237
    %v242 = vmul.f32 %v133, 0.33333334
    %v243 = vmul.f32 %v134, 0.33333334
    %v244 = vmul.f32 %v135, 0.33333334
    %v245 = vmul.f32 %v136, 0.33333334
    %v246 = vfloor.f32 %v242
    %v247 = vfloor.f32 %v243
    %v248 = vfloor.f32 %v244
    %v249 = vfloor.f32 %v245
    %v250 = vcvt.f32.s32.to.zero.pseudo %v246
    %v251 = vcvt.f32.s32.to.zero.pseudo %v247
    %v252 = vcvt.f32.s32.to.zero.pseudo %v248
    %v253 = vcvt.f32.s32.to.zero.pseudo %v249
    %s254 = smul.u32 %s53, %s52
    %v255 = vstv %s254
    %v256 = vmul.u32 %v250, %v255
    %v257 = vmul.u32 %v251, %v255
    %v258 = vmul.u32 %v252, %v255
    %v259 = vmul.u32 %v253, %v255
    %v260 = vstv %s52
    %v261 = vmul.u32 %v238, %v260
    %v262 = vmul.u32 %v239, %v260
    %v263 = vmul.u32 %v240, %v260
    %v264 = vmul.u32 %v241, %v260
    %v265 = vadd.s32 %v256, %v261
    %v266 = vadd.s32 %v257, %v262
    %v267 = vadd.s32 %v258, %v263
    %v268 = vadd.s32 %v259, %v264
    %v269 = vadd.s32 %v265, %v226
    %v270 = vadd.s32 %v266, %v227
    %v271 = vadd.s32 %v267, %v228
    %v272 = vadd.s32 %v268, %v229
    %273 = vst.msk [vmem:[%s7] sm:$0xff] %vm137, %v269
    %274 = vst.msk [vmem:[%s7 + $0x8] sm:$0xff] %vm137, %v270
    %275 = vst.msk [vmem:[%s7 + $0x10] sm:$0xff] %vm137, %v271
    %276 = vst.msk [vmem:[%s7 + $0x18] sm:$0xff] %vm137, %v272
    // Predicated region
    $region26: #{tpu_custom_call.1} parent=1 // pred_check
      _
    $region27: #{tpu_custom_call.1} parent=1 // pred_check_branch
      %278 = sbr.rel (0) target = $region29
    $region28: #{tpu_custom_call.1} parent=1 // pred_region
      _
    $region29: #{tpu_custom_call.1} parent=1 // pred_fallthru
      _
    // Predicated region
    $region30: #{tpu_custom_call.1} parent=1 // pred_check
      _
    $region31: #{tpu_custom_call.1} parent=1 // pred_check_branch
      %280 = sbr.rel (0) target = $region33
    $region32: #{tpu_custom_call.1} parent=1 // pred_region
      _
    $region33: #{tpu_custom_call.1} parent=1 // pred_fallthru
      _
    // Predicated region
    $region34: #{tpu_custom_call.1} parent=1 // pred_check
      _
    $region35: #{tpu_custom_call.1} parent=1 // pred_check_branch
      %282 = sbr.rel (0) target = $region37
    $region36: #{tpu_custom_call.1} parent=1 // pred_region
      _
    $region37: #{tpu_custom_call.1} parent=1 // pred_fallthru
      _
    // Predicated region
    $region38: #{tpu_custom_call.1} parent=1 // pred_check
      _
    $region39: #{tpu_custom_call.1} parent=1 // pred_check_branch
      %284 = sbr.rel (0) target = $region41
    $region40: #{tpu_custom_call.1} parent=1 // pred_region
      _
    $region41: #{tpu_custom_call.1} parent=1 // pred_fallthru
      _
    // Predicated region
    $region42: #{tpu_custom_call.1} parent=1 // pred_check
      _
    $region43: #{tpu_custom_call.1} parent=1 // pred_check_branch
      %286 = sbr.rel (0) target = $region45
    $region44: #{tpu_custom_call.1} parent=1 // pred_region
      _
    $region45: #{tpu_custom_call.1} parent=1 // pred_fallthru
      _
    // Predicated region
    $region46: #{tpu_custom_call.1} parent=1 // pred_check
      _
    $region47: #{tpu_custom_call.1} parent=1 // pred_check_branch
      %288 = sbr.rel (0) target = $region49
    $region48: #{tpu_custom_call.1} parent=1 // pred_region
      _
    $region49: #{tpu_custom_call.1} parent=1 // pred_fallthru
      _
    // Predicated region
    $region50: #{tpu_custom_call.1} parent=1 // pred_check
      _
    $region51: #{tpu_custom_call.1} parent=1 // pred_check_branch
      %290 = sbr.rel (0) target = $region53
    $region52: #{tpu_custom_call.1} parent=1 // pred_region
      _
    $region53: #{tpu_custom_call.1} parent=1 // pred_fallthru
      _
    // Predicated region
    $region54: #{tpu_custom_call.1} parent=1 // pred_check
      _
    $region55: #{tpu_custom_call.1} parent=1 // pred_check_branch
      %292 = sbr.rel (0) target = $region57
    $region56: #{tpu_custom_call.1} parent=1 // pred_region
      _
    $region57: #{tpu_custom_call.1} parent=1 // pred_fallthru
      _
    // Predicated region
    $region58: #{tpu_custom_call.1} parent=1 // pred_check
      _
    $region59: #{tpu_custom_call.1} parent=1 // pred_check_branch
      %294 = sbr.rel (0) target = $region61
    $region60: #{tpu_custom_call.1} parent=1 // pred_region
      _
    $region61: #{tpu_custom_call.1} parent=1 // pred_fallthru
      _
    // Predicated region
    $region62: #{tpu_custom_call.1} parent=1 // pred_check
      _
    $region63: #{tpu_custom_call.1} parent=1 // pred_check_branch
      %296 = sbr.rel (0) target = $region65
    $region64: #{tpu_custom_call.1} parent=1 // pred_region
      _
    $region65: #{tpu_custom_call.1} parent=1 // pred_fallthru
      _
    %297 = vsyncpa [#allocation3], 1
    %298 = vsyncpa [#allocation5], 1

</llo_original>
